<compile_context>
chip_gen: v6e
topology: v6e:2x2x1
jax: 0.10.0
libtpu: 0.0.40
codegen_flags: <defaults>
</compile_context>

<pallas_src>
import functools

import jax
import jax.numpy as jnp
from jax.experimental import pallas as pl
from jax.experimental.pallas import tpu as pltpu

LANE = 128          # TPU lane width
SUB = 8             # f32 sublane multiple
N_MXU_LAYERS = 4    # fc1..fc4 go through the MXU; fc5/fc6 are fused on the VPU


def _mlp_kernel(tail_ref, x_ref, p_ref, out_ref, *,
                out5, bias_row0, w5col_row0):
    """Fused 6-layer MLP forward.

    tail_ref : SMEM f32[2*out5 + 1] = [b5_0..b5_{out5-1}, w6_0..w6_{out5-1}, b6]
    x_ref    : VMEM f32[Bp, 128]    input, zero-padded on the lane axis
    p_ref    : VMEM f32[R, 128]     packed parameter slab:
                 rows [l*128, (l+1)*128) : zero-padded W_{l+1}, l = 0..3
                 row  bias_row0 + l      : zero-padded b_{l+1}, l = 0..3
                 row  w5col_row0 + j     : zero-padded column j of W5
    out_ref  : VMEM f32[Bp, 128]    result broadcast across all 128 lanes
    """
    h = x_ref[...]                                            # [Bp, 128]

    # Layers 1..4 on the MXU.  Zero padding keeps the unused lanes exactly
    # zero through bias-add + ReLU, so each layer is a clean 128-wide tile.
    for l in range(N_MXU_LAYERS):
        w = p_ref[pl.ds(l * LANE, LANE), :]                   # [128, 128]
        b = p_ref[pl.ds(bias_row0 + l, 1), :]                 # [1, 128]
        h = jnp.maximum(
            jnp.dot(h, w, preferred_element_type=jnp.float32) + b, 0.0)

    # Layers 5 (H/4 -> H/16) and 6 (H/16 -> 1) fused on the VPU/XLU:
    # the useful output width (<= 2 lanes) is too narrow to be worth MXU
    # passes, so compute y = sum_j relu(h . W5[:,j] + b5_j) * w6_j + b6.
    acc = jnp.zeros((h.shape[0], 1), jnp.float32)
    for j in range(out5):
        wcol = p_ref[pl.ds(w5col_row0 + j, 1), :]             # [1, 128]
        s = jnp.sum(h * wcol, axis=-1, keepdims=True)         # [Bp, 1]
        h5 = jnp.maximum(s + tail_ref[j], 0.0)                # + b5[j], ReLU
        acc = acc + h5 * tail_ref[out5 + j]                   # * W6[j, 0]
    y = acc + tail_ref[2 * out5]                              # + b6

    # Lane-dense store: broadcast the scalar result across all 128 lanes;
    # the wrapper slices column 0.
    out_ref[...] = jnp.broadcast_to(y, out_ref.shape)


def pack_params(params, dim_in, dim_hidden):
    """Pack (W, b) pairs into one padded VMEM slab + SMEM tail scalars."""
    H = dim_hidden
    out5 = H // 16
    assert dim_in <= LANE and H <= LANE, "this packing assumes widths <= 128"
    assert out5 >= 1

    bias_row0 = N_MXU_LAYERS * LANE
    w5col_row0 = bias_row0 + SUB
    n_w5_rows = ((out5 + SUB - 1) // SUB) * SUB
    rows = w5col_row0 + n_w5_rows                             # 528 for H=32

    slab = jnp.zeros((rows, LANE), jnp.float32)
    for l in range(N_MXU_LAYERS):
        w, b = params[l]
        slab = slab.at[l * LANE:l * LANE + w.shape[0], :w.shape[1]].set(w)
        slab = slab.at[bias_row0 + l, :b.shape[0]].set(b)

    w5, b5 = params[4]                                        # [H/4, out5], [out5]
    slab = slab.at[w5col_row0:w5col_row0 + out5, :w5.shape[0]].set(w5.T)

    w6, b6 = params[5]                                        # [out5, 1], [1]
    tail = jnp.concatenate([b5, w6[:, 0], b6]).astype(jnp.float32)
    return slab, tail, out5, bias_row0, w5col_row0


@functools.partial(jax.jit, static_argnames=("dim_in", "dim_hidden"))
def net_forward(x, params, dim_in, dim_hidden):
    """x: [B, dim_in] f32; params: list of (W [in,out], b [out])."""
    B = x.shape[0]
    Bp = ((B + SUB - 1) // SUB) * SUB

    slab, tail, out5, bias_row0, w5col_row0 = pack_params(
        params, dim_in, dim_hidden)
    x_pad = jnp.zeros((Bp, LANE), jnp.float32).at[:B, :dim_in].set(x)

    kernel = functools.partial(_mlp_kernel, out5=out5,
                               bias_row0=bias_row0, w5col_row0=w5col_row0)

    flops = 2 * Bp * LANE * LANE * N_MXU_LAYERS + 2 * Bp * LANE * out5
    bytes_accessed = 4 * (x_pad.size + slab.size + tail.size + Bp * LANE)

    out = pl.pallas_call(
        kernel,
        out_shape=jax.ShapeDtypeStruct((Bp, LANE), jnp.float32),
        grid=(),
        in_specs=[
            pl.BlockSpec(memory_space=pltpu.MemorySpace.SMEM),  # tail scalars
            pl.BlockSpec(x_pad.shape, lambda: (0, 0)),          # x (one DMA)
            pl.BlockSpec(slab.shape, lambda: (0, 0)),           # packed params
        ],
        out_specs=pl.BlockSpec((Bp, LANE), lambda: (0, 0)),
        compiler_params=pltpu.CompilerParams(
            vmem_limit_bytes=32 * 1024 * 1024),
        cost_estimate=pl.CostEstimate(flops=int(flops), transcendentals=0,
                                      bytes_accessed=int(bytes_accessed)),
    )(tail, x_pad, slab)
    return out[:B, :1]


def init_params(key, dim_in, dim_hidden):
    """Deterministic PyTorch-style (Kaiming-uniform-ish) Linear init."""
    sizes = [
        (dim_in, dim_hidden),
        (dim_hidden, dim_hidden),
        (dim_hidden, dim_hidden),
        (dim_hidden, dim_hidden // 4),
        (dim_hidden // 4, dim_hidden // 16),
        (dim_hidden // 16, 1),
    ]
    params = []
    for fan_in, fan_out in sizes:
        key, kw, kb = jax.random.split(key, 3)
        bound = 1.0 / jnp.sqrt(jnp.float32(fan_in))
        w = jax.random.uniform(kw, (fan_in, fan_out), jnp.float32,
                               minval=-bound, maxval=bound)
        b = jax.random.uniform(kb, (fan_out,), jnp.float32,
                               minval=-bound, maxval=bound)
        params.append((w, b))
    return params


def reference_forward(x, params):
    h = x
    for i, (w, b) in enumerate(params):
        h = h @ w + b
        if i < len(params) - 1:
            h = jnp.maximum(h, 0.0)
    return h


if __name__ == "__main__":
    key = jax.random.PRNGKey(0)
    dim_in, dim_hidden = 16, 32   # dim_hidden // 16 == 2, final out == 1
    batch = 8

    k_x, k_p = jax.random.split(key)
    x = jax.random.normal(k_x, (batch, dim_in), jnp.float32)
    params = init_params(k_p, dim_in, dim_hidden)

    out = net_forward(x, params, dim_in, dim_hidden)
    out = jax.block_until_ready(out)

    ref = reference_forward(x, params)
    assert out.shape == (batch, 1), out.shape
    assert jnp.allclose(out, ref, atol=1e-4, rtol=1e-4), "mismatch vs reference"

    print("KERNEL_OK")
</pallas_src>

<mosaic_0001>
module attributes {stable_mosaic.version = 11 : i64} {
  func.func @_mlp_kernel(%arg0: memref<5xf32, #tpu.memory_space<smem>>, %arg1: memref<8x128xf32, #tpu.memory_space<vmem>>, %arg2: memref<528x128xf32, #tpu.memory_space<vmem>>, %arg3: memref<8x128xf32, #tpu.memory_space<vmem>>) attributes {dimension_semantics = [], scalar_prefetch = 0 : i64, scratch_operands = 0 : i64, tpu.core_type = #tpu.core_type<tc>} {
    %c0 = arith.constant 0 : index
    %c0_0 = arith.constant 0 : index
    %0 = vector.load %arg1[%c0, %c0_0] : memref<8x128xf32, #tpu.memory_space<vmem>>, vector<8x128xf32>
    %c0_1 = arith.constant 0 : index
    %c0_2 = arith.constant 0 : index
    %1 = vector.load %arg2[%c0_1, %c0_2] : memref<528x128xf32, #tpu.memory_space<vmem>>, vector<128x128xf32>
    %c512 = arith.constant 512 : index
    %c0_3 = arith.constant 0 : index
    %2 = vector.load %arg2[%c512, %c0_3] : memref<528x128xf32, #tpu.memory_space<vmem>>, vector<1x128xf32>
    %cst = arith.constant dense<0.000000e+00> : vector<8x128xf32>
    %3 = tpu.matmul %0, %1, %cst {dimension_numbers = #tpu.dot_dimension_numbers<[1], [0], [0], [1], [0, 0, 1, 1], [], []>} : vector<8x128xf32>, vector<128x128xf32>, vector<8x128xf32> -> vector<8x128xf32>
    %4 = vector.broadcast %2 : vector<1x128xf32> to vector<8x128xf32>
    %5 = arith.addf %3, %4 : vector<8x128xf32>
    %cst_4 = arith.constant 0.000000e+00 : f32
    %6 = vector.broadcast %cst_4 : f32 to vector<8x128xf32>
    %7 = arith.maximumf %5, %6 : vector<8x128xf32>
    %c128 = arith.constant 128 : index
    %c0_5 = arith.constant 0 : index
    %8 = vector.load %arg2[%c128, %c0_5] : memref<528x128xf32, #tpu.memory_space<vmem>>, vector<128x128xf32>
    %c513 = arith.constant 513 : index
    %c0_6 = arith.constant 0 : index
    %9 = vector.load %arg2[%c513, %c0_6] : memref<528x128xf32, #tpu.memory_space<vmem>>, vector<1x128xf32>
    %cst_7 = arith.constant dense<0.000000e+00> : vector<8x128xf32>
    %10 = tpu.matmul %7, %8, %cst_7 {dimension_numbers = #tpu.dot_dimension_numbers<[1], [0], [0], [1], [0, 0, 1, 1], [], []>} : vector<8x128xf32>, vector<128x128xf32>, vector<8x128xf32> -> vector<8x128xf32>
    %11 = vector.broadcast %9 : vector<1x128xf32> to vector<8x128xf32>
    %12 = arith.addf %10, %11 : vector<8x128xf32>
    %cst_8 = arith.constant 0.000000e+00 : f32
    %13 = vector.broadcast %cst_8 : f32 to vector<8x128xf32>
    %14 = arith.maximumf %12, %13 : vector<8x128xf32>
    %c256 = arith.constant 256 : index
    %c0_9 = arith.constant 0 : index
    %15 = vector.load %arg2[%c256, %c0_9] : memref<528x128xf32, #tpu.memory_space<vmem>>, vector<128x128xf32>
    %c514 = arith.constant 514 : index
    %c0_10 = arith.constant 0 : index
    %16 = vector.load %arg2[%c514, %c0_10] : memref<528x128xf32, #tpu.memory_space<vmem>>, vector<1x128xf32>
    %cst_11 = arith.constant dense<0.000000e+00> : vector<8x128xf32>
    %17 = tpu.matmul %14, %15, %cst_11 {dimension_numbers = #tpu.dot_dimension_numbers<[1], [0], [0], [1], [0, 0, 1, 1], [], []>} : vector<8x128xf32>, vector<128x128xf32>, vector<8x128xf32> -> vector<8x128xf32>
    %18 = vector.broadcast %16 : vector<1x128xf32> to vector<8x128xf32>
    %19 = arith.addf %17, %18 : vector<8x128xf32>
    %cst_12 = arith.constant 0.000000e+00 : f32
    %20 = vector.broadcast %cst_12 : f32 to vector<8x128xf32>
    %21 = arith.maximumf %19, %20 : vector<8x128xf32>
    %c384 = arith.constant 384 : index
    %c0_13 = arith.constant 0 : index
    %22 = vector.load %arg2[%c384, %c0_13] : memref<528x128xf32, #tpu.memory_space<vmem>>, vector<128x128xf32>
    %c515 = arith.constant 515 : index
    %c0_14 = arith.constant 0 : index
    %23 = vector.load %arg2[%c515, %c0_14] : memref<528x128xf32, #tpu.memory_space<vmem>>, vector<1x128xf32>
    %cst_15 = arith.constant dense<0.000000e+00> : vector<8x128xf32>
    %24 = tpu.matmul %21, %22, %cst_15 {dimension_numbers = #tpu.dot_dimension_numbers<[1], [0], [0], [1], [0, 0, 1, 1], [], []>} : vector<8x128xf32>, vector<128x128xf32>, vector<8x128xf32> -> vector<8x128xf32>
    %25 = vector.broadcast %23 : vector<1x128xf32> to vector<8x128xf32>
    %26 = arith.addf %24, %25 : vector<8x128xf32>
    %cst_16 = arith.constant 0.000000e+00 : f32
    %27 = vector.broadcast %cst_16 : f32 to vector<8x128xf32>
    %28 = arith.maximumf %26, %27 : vector<8x128xf32>
    %cst_17 = arith.constant 0.000000e+00 : f32
    %29 = vector.broadcast %cst_17 : f32 to vector<8x1xf32>
    %c520 = arith.constant 520 : index
    %c0_18 = arith.constant 0 : index
    %30 = vector.load %arg2[%c520, %c0_18] : memref<528x128xf32, #tpu.memory_space<vmem>>, vector<1x128xf32>
    %31 = vector.broadcast %30 : vector<1x128xf32> to vector<8x128xf32>
    %32 = arith.mulf %28, %31 : vector<8x128xf32>
    %cst_19 = arith.constant dense<0.000000e+00> : vector<8xf32>
    %33 = vector.multi_reduction <add>, %32, %cst_19 [1] : vector<8x128xf32> to vector<8xf32>
    %34 = vector.shape_cast %33 : vector<8xf32> to vector<8x1xf32>
    %c0_20 = arith.constant 0 : index
    %35 = memref.load %arg0[%c0_20] : memref<5xf32, #tpu.memory_space<smem>>
    %36 = vector.broadcast %35 : f32 to vector<8x1xf32>
    %37 = arith.addf %34, %36 : vector<8x1xf32>
    %cst_21 = arith.constant 0.000000e+00 : f32
    %38 = vector.broadcast %cst_21 : f32 to vector<8x1xf32>
    %39 = arith.maximumf %37, %38 : vector<8x1xf32>
    %c2 = arith.constant 2 : index
    %40 = memref.load %arg0[%c2] : memref<5xf32, #tpu.memory_space<smem>>
    %41 = vector.broadcast %40 : f32 to vector<8x1xf32>
    %42 = arith.mulf %39, %41 : vector<8x1xf32>
    %43 = arith.addf %29, %42 : vector<8x1xf32>
    %c521 = arith.constant 521 : index
    %c0_22 = arith.constant 0 : index
    %44 = vector.load %arg2[%c521, %c0_22] : memref<528x128xf32, #tpu.memory_space<vmem>>, vector<1x128xf32>
    %45 = vector.broadcast %44 : vector<1x128xf32> to vector<8x128xf32>
    %46 = arith.mulf %28, %45 : vector<8x128xf32>
    %cst_23 = arith.constant dense<0.000000e+00> : vector<8xf32>
    %47 = vector.multi_reduction <add>, %46, %cst_23 [1] : vector<8x128xf32> to vector<8xf32>
    %48 = vector.shape_cast %47 : vector<8xf32> to vector<8x1xf32>
    %c1 = arith.constant 1 : index
    %49 = memref.load %arg0[%c1] : memref<5xf32, #tpu.memory_space<smem>>
    %50 = vector.broadcast %49 : f32 to vector<8x1xf32>
    %51 = arith.addf %48, %50 : vector<8x1xf32>
    %cst_24 = arith.constant 0.000000e+00 : f32
    %52 = vector.broadcast %cst_24 : f32 to vector<8x1xf32>
    %53 = arith.maximumf %51, %52 : vector<8x1xf32>
    %c3 = arith.constant 3 : index
    %54 = memref.load %arg0[%c3] : memref<5xf32, #tpu.memory_space<smem>>
    %55 = vector.broadcast %54 : f32 to vector<8x1xf32>
    %56 = arith.mulf %53, %55 : vector<8x1xf32>
    %57 = arith.addf %43, %56 : vector<8x1xf32>
    %c4 = arith.constant 4 : index
    %58 = memref.load %arg0[%c4] : memref<5xf32, #tpu.memory_space<smem>>
    %59 = vector.broadcast %58 : f32 to vector<8x1xf32>
    %60 = arith.addf %57, %59 : vector<8x1xf32>
    %61 = vector.shape_cast %60 : vector<8x1xf32> to vector<8x1xf32>
    %62 = vector.broadcast %61 : vector<8x1xf32> to vector<8x128xf32>
    %c0_25 = arith.constant 0 : index
    %c0_26 = arith.constant 0 : index
    %63 = vector.load %arg3[%c0_25, %c0_26] : memref<8x128xf32, #tpu.memory_space<vmem>>, vector<8x128xf32>
    tpu.vector_store %arg3[%c0_25, %c0_26], %62 {strides = array<i32>} : memref<8x128xf32, #tpu.memory_space<vmem>>, vector<8x128xf32>,
    return
  }
}

</mosaic_0001>

<llo_original>
// kernel: net_forward.1
$region0: #{net_forward.1}
  #allocation0 [shape = 'u32[]', space=smem, size = 0x4, offset = 0x4, fixed_abs, tag = 'smem constant byte address 0x4 - core index']
  #allocation1 [shape = 'u32[144,128]{1,0:T(1,128)}', space=vmem, size = 0x12000, scoped, tag = 'internal scratch']
  %s0 = inlined_call_operand.vmem [shape: f32[5], index: 0, kind: input, shape index: {}]
  %s1 = inlined_call_operand.vmem [shape: f32[8,128], index: 1, kind: input, shape index: {}]
  %s2 = inlined_call_operand.vmem [shape: f32[528,128], index: 2, kind: input, shape index: {}]
  %s3 = inlined_call_operand.vmem [shape: f32[8,128], index: 3, kind: output, shape index: {}]
  %s4 = sld [smem:[#allocation0]]
  $region26: #{net_forward.1} parent=0
    _
  %s6 = ssub.s32 1, %s4
  %s7 = scalar_select 0, %s6, %s4
  $region1: #{net_forward.1} parent=0
    #allocation2 [shape = 'u8[512]{0}', space=smem, size = 0x200, scoped, tag = 'input window, operand 0, single buffered']
    #allocation3 [shape = 's32[1]{0}', space=sflag, size = 0x4, scoped, tag = 'scoped memory for net_forward.1']
    %8 = vsyncpa [#allocation3], 0
    // Predicated region
    $region2: #{net_forward.1} parent=1 // pred_check
      _
    $region3: #{net_forward.1} parent=1 // pred_check_branch
      %10 = sbr.rel (0) target = $region5
    $region4: #{net_forward.1} parent=1 // pred_region
      %s12 = ssub.s32 16, 16
      %13 = vsyncadd [#allocation3], %s12
      %s15 = sshll.u32 %s0, 4
      %s16 = int_to_ptr.vmem [resolvable:$true] %s15
      %18 = dma.vmem_to_smem %s16, 16, [#allocation2], [#allocation3]
    $region5: #{net_forward.1} parent=1 // pred_fallthru
      _
    // Predicated region
    $region6: #{net_forward.1} parent=1 // pred_check
      _
    $region7: #{net_forward.1} parent=1 // pred_check_branch
      %20 = sbr.rel (0) target = $region9
    $region8: #{net_forward.1} parent=1 // pred_region
      _
    $region9: #{net_forward.1} parent=1 // pred_fallthru
      _
    // Predicated region
    $region10: #{net_forward.1} parent=1 // pred_check
      _
    $region11: #{net_forward.1} parent=1 // pred_check_branch
      %22 = sbr.rel (0) target = $region13
    $region12: #{net_forward.1} parent=1 // pred_region
      _
    $region13: #{net_forward.1} parent=1 // pred_fallthru
      _
    // Predicated region
    $region14: #{net_forward.1} parent=1 // pred_check
      _
    $region15: #{net_forward.1} parent=1 // pred_check_branch
      %24 = sbr.rel (0) target = $region17
    $region16: #{net_forward.1} parent=1 // pred_region
      %25 = dma.done [#allocation3], 16
    $region17: #{net_forward.1} parent=1 // pred_fallthru
      _
    %26 = sfence
    %v27 = vld [vmem:[%s1] sm:$0xff]
    %v28 = vld [vmem:[%s2] sm:$0xff]
    %v29 = vld [vmem:[%s2 + $0x8] sm:$0xff]
    %v30 = vld [vmem:[%s2 + $0x10] sm:$0xff]
    %v31 = vld [vmem:[%s2 + $0x18] sm:$0xff]
    %v32 = vld [vmem:[%s2 + $0x20] sm:$0xff]
    %v33 = vld [vmem:[%s2 + $0x28] sm:$0xff]
    %v34 = vld [vmem:[%s2 + $0x30] sm:$0xff]
    %v35 = vld [vmem:[%s2 + $0x38] sm:$0xff]
    %v36 = vld [vmem:[%s2 + $0x40] sm:$0xff]
    %v37 = vld [vmem:[%s2 + $0x48] sm:$0xff]
    %v38 = vld [vmem:[%s2 + $0x50] sm:$0xff]
    %v39 = vld [vmem:[%s2 + $0x58] sm:$0xff]
    %v40 = vld [vmem:[%s2 + $0x60] sm:$0xff]
    %v41 = vld [vmem:[%s2 + $0x68] sm:$0xff]
    %v42 = vld [vmem:[%s2 + $0x70] sm:$0xff]
    %v43 = vld [vmem:[%s2 + $0x78] sm:$0xff]
    %v44 = vld [vmem:[%s2 + $0x200] sm:$0x1]
    %v45 = vlaneseq
    %v46 = vshrl.u32 %v45, 7
    %v47 = vsub.s32 0, %v46
    %v48 = vrot.slane %v44, %v47
    %49 = vmatprep.subr.mxu0 0.0
    %50 = vmatpush1.msra.mxu0 %v43
    %51 = vmatprep.subr.mxu0 0.0
    %52 = vmatpush1.msra.mxu0 %v42
    %53 = vmatprep.subr.mxu0 0.0
    %54 = vmatpush1.msra.mxu0 %v41
    %55 = vmatprep.subr.mxu0 0.0
    %56 = vmatpush1.msra.mxu0 %v40
    %57 = vmatprep.subr.mxu0 0.0
    %58 = vmatpush1.msra.mxu0 %v39
    %59 = vmatprep.subr.mxu0 0.0
    %60 = vmatpush1.msra.mxu0 %v38
    %61 = vmatprep.subr.mxu0 0.0
    %62 = vmatpush1.msra.mxu0 %v37
    %63 = vmatprep.subr.mxu0 0.0
    %64 = vmatpush1.msra.mxu0 %v36
    %65 = vmatprep.subr.mxu0 0.0
    %66 = vmatpush1.msra.mxu0 %v35
    %67 = vmatprep.subr.mxu0 0.0
    %68 = vmatpush1.msra.mxu0 %v34
    %69 = vmatprep.subr.mxu0 0.0
    %70 = vmatpush1.msra.mxu0 %v33
    %71 = vmatprep.subr.mxu0 0.0
    %72 = vmatpush1.msra.mxu0 %v32
    %73 = vmatprep.subr.mxu0 0.0
    %74 = vmatpush1.msra.mxu0 %v31
    %75 = vmatprep.subr.mxu0 0.0
    %76 = vmatpush1.msra.mxu0 %v30
    %77 = vmatprep.subr.mxu0 0.0
    %78 = vmatpush1.msra.mxu0 %v29
    %79 = vmatprep.subr.mxu0 0.0
    %80 = vmatpush1.msra.mxu0 %v28
    %81 = vmatprep.subr.mxu0 0.0
    %82 = vmatpush2.msra.mxu0 0.0
    %83 = vmatprep.subr.mxu0 0.0
    %84 = vmatpush2.msra.mxu0 0.0
    %85 = vmatprep.subr.mxu0 0.0
    %86 = vmatpush2.msra.mxu0 0.0
    %87 = vmatprep.subr.mxu0 0.0
    %88 = vmatpush2.msra.mxu0 0.0
    %89 = vmatprep.subr.mxu0 0.0
    %90 = vmatpush2.msra.mxu0 0.0
    %91 = vmatprep.subr.mxu0 0.0
    %92 = vmatpush2.msra.mxu0 0.0
    %93 = vmatprep.subr.mxu0 0.0
    %94 = vmatpush2.msra.mxu0 0.0
    %95 = vmatprep.subr.mxu0 0.0
    %96 = vmatpush2.msra.mxu0 0.0
    %97 = vmatprep.subr.mxu0 0.0
    %98 = vmatpush2.msra.mxu0 0.0
    %99 = vmatprep.subr.mxu0 0.0
    %100 = vmatpush2.msra.mxu0 0.0
    %101 = vmatprep.subr.mxu0 0.0
    %102 = vmatpush2.msra.mxu0 0.0
    %103 = vmatprep.subr.mxu0 0.0
    %104 = vmatpush2.msra.mxu0 0.0
    %105 = vmatprep.subr.mxu0 0.0
    %106 = vmatpush2.msra.mxu0 0.0
    %107 = vmatprep.subr.mxu0 0.0
    %108 = vmatpush2.msra.mxu0 0.0
    %109 = vmatprep.subr.mxu0 0.0
    %110 = vmatpush2.msra.mxu0 0.0
    %111 = vmatprep.subr.mxu0 0.0
    %112 = vmatpush2.msra.mxu0 0.0
    %113 = vmatprep.mubr.f32.mxu0 0.0
    %114 = vmatmul.mubr.f32.gmra.mxu0 %v27
    %v115 = vpop.f32.mrf.mxu0
    %v116 = vadd.f32 %v48, %v115
    %v117 = vpop.f32.mrf.mxu0
    %118 = vdwg.mxu0
    %v119 = vmax.f32 %v116, 0.0
    %v120 = vld [vmem:[%s2 + $0x80] sm:$0xff]
    %v121 = vld [vmem:[%s2 + $0x88] sm:$0xff]
    %v122 = vld [vmem:[%s2 + $0x90] sm:$0xff]
    %v123 = vld [vmem:[%s2 + $0x98] sm:$0xff]
    %v124 = vld [vmem:[%s2 + $0xa0] sm:$0xff]
    %v125 = vld [vmem:[%s2 + $0xa8] sm:$0xff]
    %v126 = vld [vmem:[%s2 + $0xb0] sm:$0xff]
    %v127 = vld [vmem:[%s2 + $0xb8] sm:$0xff]
    %v128 = vld [vmem:[%s2 + $0xc0] sm:$0xff]
    %v129 = vld [vmem:[%s2 + $0xc8] sm:$0xff]
    %v130 = vld [vmem:[%s2 + $0xd0] sm:$0xff]
    %v131 = vld [vmem:[%s2 + $0xd8] sm:$0xff]
    %v132 = vld [vmem:[%s2 + $0xe0] sm:$0xff]
    %v133 = vld [vmem:[%s2 + $0xe8] sm:$0xff]
    %v134 = vld [vmem:[%s2 + $0xf0] sm:$0xff]
    %v135 = vld [vmem:[%s2 + $0xf8] sm:$0xff]
    %v136 = vld [vmem:[%s2 + $0x201] sm:$0x1]
    %v137 = vlaneseq
    %v138 = vshrl.u32 %v137, 7
    %v139 = vsub.s32 0, %v138
    %v140 = vrot.slane %v136, %v139
    %141 = vmatprep.subr.mxu0 0.0
    %142 = vmatpush1.msra.mxu0 %v135
    %143 = vmatprep.subr.mxu0 0.0
    %144 = vmatpush1.msra.mxu0 %v134
    %145 = vmatprep.subr.mxu0 0.0
    %146 = vmatpush1.msra.mxu0 %v133
    %147 = vmatprep.subr.mxu0 0.0
    %148 = vmatpush1.msra.mxu0 %v132
    %149 = vmatprep.subr.mxu0 0.0
    %150 = vmatpush1.msra.mxu0 %v131
    %151 = vmatprep.subr.mxu0 0.0
    %152 = vmatpush1.msra.mxu0 %v130
    %153 = vmatprep.subr.mxu0 0.0
    %154 = vmatpush1.msra.mxu0 %v129
    %155 = vmatprep.subr.mxu0 0.0
    %156 = vmatpush1.msra.mxu0 %v128
    %157 = vmatprep.subr.mxu0 0.0
    %158 = vmatpush1.msra.mxu0 %v127
    %159 = vmatprep.subr.mxu0 0.0
    %160 = vmatpush1.msra.mxu0 %v126
    %161 = vmatprep.subr.mxu0 0.0
    %162 = vmatpush1.msra.mxu0 %v125
    %163 = vmatprep.subr.mxu0 0.0
    %164 = vmatpush1.msra.mxu0 %v124
    %165 = vmatprep.subr.mxu0 0.0
    %166 = vmatpush1.msra.mxu0 %v123
    %167 = vmatprep.subr.mxu0 0.0
    %168 = vmatpush1.msra.mxu0 %v122
    %169 = vmatprep.subr.mxu0 0.0
    %170 = vmatpush1.msra.mxu0 %v121
    %171 = vmatprep.subr.mxu0 0.0
    %172 = vmatpush1.msra.mxu0 %v120
    %173 = vmatprep.subr.mxu0 0.0
    %174 = vmatpush2.msra.mxu0 0.0
    %175 = vmatprep.subr.mxu0 0.0
    %176 = vmatpush2.msra.mxu0 0.0
    %177 = vmatprep.subr.mxu0 0.0
    %178 = vmatpush2.msra.mxu0 0.0
    %179 = vmatprep.subr.mxu0 0.0
    %180 = vmatpush2.msra.mxu0 0.0
    %181 = vmatprep.subr.mxu0 0.0
    %182 = vmatpush2.msra.mxu0 0.0
    %183 = vmatprep.subr.mxu0 0.0
    %184 = vmatpush2.msra.mxu0 0.0
    %185 = vmatprep.subr.mxu0 0.0
    %186 = vmatpush2.msra.mxu0 0.0
    %187 = vmatprep.subr.mxu0 0.0
    %188 = vmatpush2.msra.mxu0 0.0
    %189 = vmatprep.subr.mxu0 0.0
    %190 = vmatpush2.msra.mxu0 0.0
    %191 = vmatprep.subr.mxu0 0.0
    %192 = vmatpush2.msra.mxu0 0.0
    %193 = vmatprep.subr.mxu0 0.0
    %194 = vmatpush2.msra.mxu0 0.0
    %195 = vmatprep.subr.mxu0 0.0
    %196 = vmatpush2.msra.mxu0 0.0
    %197 = vmatprep.subr.mxu0 0.0
    %198 = vmatpush2.msra.mxu0 0.0
    %199 = vmatprep.subr.mxu0 0.0
    %200 = vmatpush2.msra.mxu0 0.0
    %201 = vmatprep.subr.mxu0 0.0
    %202 = vmatpush2.msra.mxu0 0.0
    %203 = vmatprep.subr.mxu0 0.0
    %204 = vmatpush2.msra.mxu0 0.0
    %205 = vmatprep.mubr.f32.mxu0 0.0
    %206 = vmatmul.mubr.f32.gmra.mxu0 %v119
    %v207 = vpop.f32.mrf.mxu0
    %v208 = vadd.f32 %v140, %v207
    %v209 = vpop.f32.mrf.mxu0
    %210 = vdwg.mxu0
    %v211 = vmax.f32 %v208, 0.0
    %v212 = vld [vmem:[%s2 + $0x100] sm:$0xff]
    %v213 = vld [vmem:[%s2 + $0x108] sm:$0xff]
    %v214 = vld [vmem:[%s2 + $0x110] sm:$0xff]
    %v215 = vld [vmem:[%s2 + $0x118] sm:$0xff]
    %v216 = vld [vmem:[%s2 + $0x120] sm:$0xff]
    %v217 = vld [vmem:[%s2 + $0x128] sm:$0xff]
    %v218 = vld [vmem:[%s2 + $0x130] sm:$0xff]
    %v219 = vld [vmem:[%s2 + $0x138] sm:$0xff]
    %v220 = vld [vmem:[%s2 + $0x140] sm:$0xff]
    %v221 = vld [vmem:[%s2 + $0x148] sm:$0xff]
    %v222 = vld [vmem:[%s2 + $0x150] sm:$0xff]
    %v223 = vld [vmem:[%s2 + $0x158] sm:$0xff]
    %v224 = vld [vmem:[%s2 + $0x160] sm:$0xff]
    %v225 = vld [vmem:[%s2 + $0x168] sm:$0xff]
    %v226 = vld [vmem:[%s2 + $0x170] sm:$0xff]
    %v227 = vld [vmem:[%s2 + $0x178] sm:$0xff]
    %v228 = vld [vmem:[%s2 + $0x202] sm:$0x1]
    %v229 = vlaneseq
    %v230 = vshrl.u32 %v229, 7
    %v231 = vsub.s32 0, %v230
    %v232 = vrot.slane %v228, %v231
    %233 = vmatprep.subr.mxu0 0.0
    %234 = vmatpush1.msra.mxu0 %v227
    %235 = vmatprep.subr.mxu0 0.0
    %236 = vmatpush1.msra.mxu0 %v226
    %237 = vmatprep.subr.mxu0 0.0
    %238 = vmatpush1.msra.mxu0 %v225
    %239 = vmatprep.subr.mxu0 0.0
    %240 = vmatpush1.msra.mxu0 %v224
    %241 = vmatprep.subr.mxu0 0.0
    %242 = vmatpush1.msra.mxu0 %v223
    %243 = vmatprep.subr.mxu0 0.0
    %244 = vmatpush1.msra.mxu0 %v222
    %245 = vmatprep.subr.mxu0 0.0
    %246 = vmatpush1.msra.mxu0 %v221
    %247 = vmatprep.subr.mxu0 0.0
    %248 = vmatpush1.msra.mxu0 %v220
    %249 = vmatprep.subr.mxu0 0.0
    %250 = vmatpush1.msra.mxu0 %v219
    %251 = vmatprep.subr.mxu0 0.0
    %252 = vmatpush1.msra.mxu0 %v218
    %253 = vmatprep.subr.mxu0 0.0
    %254 = vmatpush1.msra.mxu0 %v217
    %255 = vmatprep.subr.mxu0 0.0
    %256 = vmatpush1.msra.mxu0 %v216
    %257 = vmatprep.subr.mxu0 0.0
    %258 = vmatpush1.msra.mxu0 %v215
    %259 = vmatprep.subr.mxu0 0.0
    %260 = vmatpush1.msra.mxu0 %v214
    %261 = vmatprep.subr.mxu0 0.0
    %262 = vmatpush1.msra.mxu0 %v213
    %263 = vmatprep.subr.mxu0 0.0
    %264 = vmatpush1.msra.mxu0 %v212
    %265 = vmatprep.subr.mxu0 0.0
    %266 = vmatpush2.msra.mxu0 0.0
    %267 = vmatprep.subr.mxu0 0.0
    %268 = vmatpush2.msra.mxu0 0.0
    %269 = vmatprep.subr.mxu0 0.0
    %270 = vmatpush2.msra.mxu0 0.0
    %271 = vmatprep.subr.mxu0 0.0
    %272 = vmatpush2.msra.mxu0 0.0
    %273 = vmatprep.subr.mxu0 0.0
    %274 = vmatpush2.msra.mxu0 0.0
    %275 = vmatprep.subr.mxu0 0.0
    %276 = vmatpush2.msra.mxu0 0.0
    %277 = vmatprep.subr.mxu0 0.0
    %278 = vmatpush2.msra.mxu0 0.0
    %279 = vmatprep.subr.mxu0 0.0
    %280 = vmatpush2.msra.mxu0 0.0
    %281 = vmatprep.subr.mxu0 0.0
    %282 = vmatpush2.msra.mxu0 0.0
    %283 = vmatprep.subr.mxu0 0.0
    %284 = vmatpush2.msra.mxu0 0.0
    %285 = vmatprep.subr.mxu0 0.0
    %286 = vmatpush2.msra.mxu0 0.0
    %287 = vmatprep.subr.mxu0 0.0
    %288 = vmatpush2.msra.mxu0 0.0
    %289 = vmatprep.subr.mxu0 0.0
    %290 = vmatpush2.msra.mxu0 0.0
    %291 = vmatprep.subr.mxu0 0.0
    %292 = vmatpush2.msra.mxu0 0.0
    %293 = vmatprep.subr.mxu0 0.0
    %294 = vmatpush2.msra.mxu0 0.0
    %295 = vmatprep.subr.mxu0 0.0
    %296 = vmatpush2.msra.mxu0 0.0
    %297 = vmatprep.mubr.f32.mxu0 0.0
    %298 = vmatmul.mubr.f32.gmra.mxu0 %v211
    %v299 = vpop.f32.mrf.mxu0
    %v300 = vadd.f32 %v232, %v299
    %v301 = vpop.f32.mrf.mxu0
    %302 = vdwg.mxu0
    %v303 = vmax.f32 %v300, 0.0
    %v304 = vld [vmem:[%s2 + $0x180] sm:$0xff]
    %v305 = vld [vmem:[%s2 + $0x188] sm:$0xff]
    %v306 = vld [vmem:[%s2 + $0x190] sm:$0xff]
    %v307 = vld [vmem:[%s2 + $0x198] sm:$0xff]
    %v308 = vld [vmem:[%s2 + $0x1a0] sm:$0xff]
    %v309 = vld [vmem:[%s2 + $0x1a8] sm:$0xff]
    %v310 = vld [vmem:[%s2 + $0x1b0] sm:$0xff]
    %v311 = vld [vmem:[%s2 + $0x1b8] sm:$0xff]
    %v312 = vld [vmem:[%s2 + $0x1c0] sm:$0xff]
    %v313 = vld [vmem:[%s2 + $0x1c8] sm:$0xff]
    %v314 = vld [vmem:[%s2 + $0x1d0] sm:$0xff]
    %v315 = vld [vmem:[%s2 + $0x1d8] sm:$0xff]
    %v316 = vld [vmem:[%s2 + $0x1e0] sm:$0xff]
    %v317 = vld [vmem:[%s2 + $0x1e8] sm:$0xff]
    %v318 = vld [vmem:[%s2 + $0x1f0] sm:$0xff]
    %v319 = vld [vmem:[%s2 + $0x1f8] sm:$0xff]
    %v320 = vld [vmem:[%s2 + $0x203] sm:$0x1]
    %v321 = vlaneseq
    %v322 = vshrl.u32 %v321, 7
    %v323 = vsub.s32 0, %v322
    %v324 = vrot.slane %v320, %v323
    %325 = vmatprep.subr.mxu0 0.0
    %326 = vmatpush1.msra.mxu0 %v319
    %327 = vmatprep.subr.mxu0 0.0
    %328 = vmatpush1.msra.mxu0 %v318
    %329 = vmatprep.subr.mxu0 0.0
    %330 = vmatpush1.msra.mxu0 %v317
    %331 = vmatprep.subr.mxu0 0.0
    %332 = vmatpush1.msra.mxu0 %v316
    %333 = vmatprep.subr.mxu0 0.0
    %334 = vmatpush1.msra.mxu0 %v315
    %335 = vmatprep.subr.mxu0 0.0
    %336 = vmatpush1.msra.mxu0 %v314
    %337 = vmatprep.subr.mxu0 0.0
    %338 = vmatpush1.msra.mxu0 %v313
    %339 = vmatprep.subr.mxu0 0.0
    %340 = vmatpush1.msra.mxu0 %v312
    %341 = vmatprep.subr.mxu0 0.0
    %342 = vmatpush1.msra.mxu0 %v311
    %343 = vmatprep.subr.mxu0 0.0
    %344 = vmatpush1.msra.mxu0 %v310
    %345 = vmatprep.subr.mxu0 0.0
    %346 = vmatpush1.msra.mxu0 %v309
    %347 = vmatprep.subr.mxu0 0.0
    %348 = vmatpush1.msra.mxu0 %v308
    %349 = vmatprep.subr.mxu0 0.0
    %350 = vmatpush1.msra.mxu0 %v307
    %351 = vmatprep.subr.mxu0 0.0
    %352 = vmatpush1.msra.mxu0 %v306
    %353 = vmatprep.subr.mxu0 0.0
    %354 = vmatpush1.msra.mxu0 %v305
    %355 = vmatprep.subr.mxu0 0.0
    %356 = vmatpush1.msra.mxu0 %v304
    %357 = vmatprep.subr.mxu0 0.0
    %358 = vmatpush2.msra.mxu0 0.0
    %359 = vmatprep.subr.mxu0 0.0
    %360 = vmatpush2.msra.mxu0 0.0
    %361 = vmatprep.subr.mxu0 0.0
    %362 = vmatpush2.msra.mxu0 0.0
    %363 = vmatprep.subr.mxu0 0.0
    %364 = vmatpush2.msra.mxu0 0.0
    %365 = vmatprep.subr.mxu0 0.0
    %366 = vmatpush2.msra.mxu0 0.0
    %367 = vmatprep.subr.mxu0 0.0
    %368 = vmatpush2.msra.mxu0 0.0
    %369 = vmatprep.subr.mxu0 0.0
    %370 = vmatpush2.msra.mxu0 0.0
    %371 = vmatprep.subr.mxu0 0.0
    %372 = vmatpush2.msra.mxu0 0.0
    %373 = vmatprep.subr.mxu0 0.0
    %374 = vmatpush2.msra.mxu0 0.0
    %375 = vmatprep.subr.mxu0 0.0
    %376 = vmatpush2.msra.mxu0 0.0
    %377 = vmatprep.subr.mxu0 0.0
    %378 = vmatpush2.msra.mxu0 0.0
    %379 = vmatprep.subr.mxu0 0.0
    %380 = vmatpush2.msra.mxu0 0.0
    %381 = vmatprep.subr.mxu0 0.0
    %382 = vmatpush2.msra.mxu0 0.0
    %383 = vmatprep.subr.mxu0 0.0
    %384 = vmatpush2.msra.mxu0 0.0
    %385 = vmatprep.subr.mxu0 0.0
    %386 = vmatpush2.msra.mxu0 0.0
    %387 = vmatprep.subr.mxu0 0.0
    %388 = vmatpush2.msra.mxu0 0.0
    %389 = vmatprep.mubr.f32.mxu0 0.0
    %390 = vmatmul.mubr.f32.gmra.mxu0 %v303
    %v391 = vpop.f32.mrf.mxu0
    %v392 = vadd.f32 %v324, %v391
    %v393 = vpop.f32.mrf.mxu0
    %394 = vdwg.mxu0
    %v395 = vmax.f32 %v392, 0.0
    %v396 = vld [vmem:[%s2 + $0x208] sm:$0x1]
    %v397 = vlaneseq
    %v398 = vshrl.u32 %v397, 7
    %v399 = vsub.s32 0, %v398
    %v400 = vrot.slane %v396, %v399
    %v401 = vmul.f32 %v395, %v400
    %402 = vadd.xlane.f32.xlu0 %v401
    %v403 = vpop.xlane.xlu0 %402
    %s404 = sld [smem:[#allocation2]]
    %v405 = vstv %s404
    %v406 = vadd.f32 %v403, %v405
    %v407 = vmax.f32 %v406, 0.0
    %s408 = sld [smem:[#allocation2 + $0x2]]
    %v409 = vstv %s408
    %v410 = vmul.f32 %v407, %v409
    %v411 = vadd.f32 %v410, 0.0
    %v412 = vld [vmem:[%s2 + $0x209] sm:$0x1]
    %v413 = vlaneseq
    %v414 = vshrl.u32 %v413, 7
    %v415 = vsub.s32 0, %v414
    %v416 = vrot.slane %v412, %v415
    %v417 = vmul.f32 %v395, %v416
    %418 = vadd.xlane.f32.xlu0 %v417
    %v419 = vpop.xlane.xlu0 %418
    %s420 = sld [smem:[#allocation2 + $0x1]]
    %v421 = vstv %s420
    %v422 = vadd.f32 %v419, %v421
    %v423 = vmax.f32 %v422, 0.0
    %s424 = sld [smem:[#allocation2 + $0x3]]
    %v425 = vstv %s424
    %v426 = vmul.f32 %v423, %v425
    %v427 = vadd.f32 %v411, %v426
    %s428 = sld [smem:[#allocation2 + $0x4]]
    %v429 = vstv %s428
    %v430 = vadd.f32 %v427, %v429
    %431 = vst [vmem:[%s3] sm:$0xff] %v430
    // Predicated region
    $region18: #{net_forward.1} parent=1 // pred_check
      _
    $region19: #{net_forward.1} parent=1 // pred_check_branch
      %433 = sbr.rel (0) target = $region21
    $region20: #{net_forward.1} parent=1 // pred_region
      _
    $region21: #{net_forward.1} parent=1 // pred_fallthru
      _
    // Predicated region
    $region22: #{net_forward.1} parent=1 // pred_check
      _
    $region23: #{net_forward.1} parent=1 // pred_check_branch
      %435 = sbr.rel (0) target = $region25
    $region24: #{net_forward.1} parent=1 // pred_region
      _
    $region25: #{net_forward.1} parent=1 // pred_fallthru
      _
    %436 = vsyncpa [#allocation3], 1

</llo_original>
